<compile_context>
chip_gen: v7x
topology: tpu7x:2x2x1
jax: 0.10.0
libtpu: 0.0.40
codegen_flags: <defaults>
</compile_context>

<pallas_src>
import functools

import jax
import jax.numpy as jnp
from jax.experimental import pallas as pl
from jax.experimental.pallas import tpu as pltpu


def _round_up(v, m):
    return ((v + m - 1) // m) * m


def encoder_kernel(x_ref, w1_ref, w2_ref, w3_ref, b_ref, o_ref):
    """Fused 3-layer MLP: SiLU(x@W1+b1) -> SiLU(.@W2+b2) -> .@W3+b3.

    N dims are pre-padded to 128 multiples (zero columns), so padded hidden
    lanes stay exactly zero.  x keeps its native K (= input_dim).  Matmuls
    accumulate in f32; SiLU and bias adds stay in f32 (safe on v5e).
    """
    compute_dtype = w1_ref.dtype
    x = x_ref[...].astype(compute_dtype)
    b = b_ref[...]  # (3, N_pad) f32 -- all three biases in one DMA

    h = jnp.dot(x, w1_ref[...], preferred_element_type=jnp.float32) + b[0:1, :]
    h = (h * jax.nn.sigmoid(h)).astype(compute_dtype)   # SiLU; Dropout == identity (eval)

    h = jnp.dot(h, w2_ref[...], preferred_element_type=jnp.float32) + b[1:2, :]
    h = (h * jax.nn.sigmoid(h)).astype(compute_dtype)

    out = jnp.dot(h, w3_ref[...], preferred_element_type=jnp.float32) + b[2:3, :]
    o_ref[...] = out.astype(o_ref.dtype)


def prepare_encoder_params(w1, b1, w2, b2, w3, b3, *, compute_dtype=jnp.float32):
    """One-time weight prep: pad N dims to a 128 multiple, bundle biases, cast.

    Runs once per parameter set so the per-call forward does no weight work.
    """
    input_dim, latent_dim = w1.shape
    n_pad = _round_up(latent_dim, 128)
    pad_n = n_pad - latent_dim
    w1_p = jnp.pad(w1, ((0, 0), (0, pad_n))).astype(compute_dtype)       # (input_dim, n_pad)
    w2_p = jnp.pad(w2, ((0, pad_n), (0, pad_n))).astype(compute_dtype)   # (n_pad, n_pad)
    w3_p = jnp.pad(w3, ((0, pad_n), (0, pad_n))).astype(compute_dtype)   # (n_pad, n_pad)
    # All three biases in one lane-dense (3, n_pad) f32 block -> single DMA.
    b_all = jnp.stack([b1.reshape(-1), b2.reshape(-1), b3.reshape(-1)])
    b_all = jnp.pad(b_all, ((0, 0), (0, pad_n))).astype(jnp.float32)
    return w1_p, w2_p, w3_p, b_all


def suggest_compute_dtype():
    """bf16 matmul operands on v6e/v7x (native 256x256 bf16 MXU), f32 otherwise."""
    try:
        kind = jax.devices()[0].device_kind.lower()
    except Exception:  # pragma: no cover - defensive
        return jnp.float32
    if "v6" in kind or "v7" in kind or "trillium" in kind:
        return jnp.bfloat16
    return jnp.float32


@functools.partial(jax.jit, static_argnames=("latent_dim", "block_m", "out_dtype"))
def encoder_forward(x, w1_p, w2_p, w3_p, b_all, *, latent_dim, block_m=None,
                    out_dtype=jnp.float32):
    """Eval-mode Encoder forward using pre-prepared (padded/cast) params."""
    n, input_dim = x.shape
    n_pad = w1_p.shape[1]
    compute_dtype = w1_p.dtype

    # --- batch tile selection -------------------------------------------------
    m8 = _round_up(max(n, 1), 8)
    if block_m is None:
        if m8 <= 128:
            block_m = m8                                   # single small tile
        else:
            # >=2 grid steps (both v7x TensorCores get work), capped at 512 rows
            # to amortize the ~0.35us/step pipeline overhead on big batches.
            block_m = min(512, _round_up((m8 + 1) // 2, 8))
    else:
        block_m = max(8, _round_up(block_m, 8))            # (8,128) BlockSpec rule
    m_pad = _round_up(n, block_m)

    # Only x is touched per call: cast to the compute dtype (bf16 halves its DMA
    # bytes on v6e/v7x) and pad batch rows only -- K stays at input_dim.
    x_p = x.astype(compute_dtype)
    if m_pad != n:
        x_p = jnp.pad(x_p, ((0, m_pad - n), (0, 0)))

    grid = (m_pad // block_m,)

    # --- VMEM scaling guard -----------------------------------------------------
    # Resident weights (double-buffered by default) + double-buffered x/out tiles.
    # NOTE: constant-index weight/bias specs could use pipeline_mode=pl.Buffered(1)
    # to drop their second buffer; negligible at these sizes, useful headroom when
    # latent_dim scales toward v7x's 64 MiB VMEM.
    itm = jnp.dtype(compute_dtype).itemsize
    w_bytes = (w1_p.size + w2_p.size + w3_p.size) * itm
    io_bytes = 2 * block_m * (input_dim * itm + n_pad * jnp.dtype(out_dtype).itemsize)
    vmem_est = 2 * w_bytes + io_bytes + 2 * 3 * n_pad * 4
    vmem_limit = None
    if vmem_est > 12 * 1024 * 1024:
        vmem_limit = min(int(vmem_est * 3 // 2), 100 * 1024 * 1024)

    out_pad = pl.pallas_call(
        encoder_kernel,
        out_shape=jax.ShapeDtypeStruct((m_pad, n_pad), out_dtype),
        grid_spec=pltpu.PrefetchScalarGridSpec(
            num_scalar_prefetch=0,
            grid=grid,
            in_specs=[
                # Streamed batch tile of x: K is the full (unpadded) input_dim.
                pl.BlockSpec((block_m, input_dim), lambda i: (i, 0)),
                # Weights / biases: constant index_map -> fetched once, resident
                # across all batch tiles.
                pl.BlockSpec((input_dim, n_pad), lambda i: (0, 0)),
                pl.BlockSpec((n_pad, n_pad), lambda i: (0, 0)),
                pl.BlockSpec((n_pad, n_pad), lambda i: (0, 0)),
                pl.BlockSpec((3, n_pad), lambda i: (0, 0)),
            ],
            out_specs=pl.BlockSpec((block_m, n_pad), lambda i: (i, 0)),
        ),
        compiler_params=pltpu.CompilerParams(
            dimension_semantics=("parallel",),
            vmem_limit_bytes=vmem_limit,
        ),
    )(x_p, w1_p, w2_p, w3_p, b_all)

    # Slice off batch/lane padding to match the module's output shape.  (If the
    # consumer tolerates the padded (.., n_pad) layout, return out_pad instead.)
    return out_pad[:n, :latent_dim]


def init_encoder_params(key, input_dim, latent_dim):
    """Deterministic PyTorch-style (Kaiming-uniform-ish) init, stored as (in, out)."""
    ks = jax.random.split(key, 6)

    def linear(kw, kb, fan_in, fan_out):
        bound = 1.0 / jnp.sqrt(fan_in)
        w = jax.random.uniform(kw, (fan_in, fan_out), jnp.float32, -bound, bound)
        b = jax.random.uniform(kb, (1, fan_out), jnp.float32, -bound, bound)
        return w, b

    w1, b1 = linear(ks[0], ks[1], input_dim, latent_dim)
    w2, b2 = linear(ks[2], ks[3], latent_dim, latent_dim)
    w3, b3 = linear(ks[4], ks[5], latent_dim, latent_dim)
    return w1, b1, w2, b2, w3, b3


def encoder_reference(x, w1, b1, w2, b2, w3, b3):
    """Pure-JAX reference (eval-mode Dropout == identity)."""
    silu = lambda t: t * jax.nn.sigmoid(t)
    h = silu(x @ w1 + b1)
    h = silu(h @ w2 + b2)
    return h @ w3 + b3


if __name__ == "__main__":
    key = jax.random.PRNGKey(0)
    k_x, k_x2, k_p = jax.random.split(key, 3)

    input_dim = 24    # module's input feature dim
    latent_dim = 32   # module's latent dim
    w1, b1, w2, b2, w3, b3 = init_encoder_params(k_p, input_dim, latent_dim)

    # --- f32 path (weight prep happens once, outside the per-call forward) ----
    params_f32 = prepare_encoder_params(w1, b1, w2, b2, w3, b3,
                                        compute_dtype=jnp.float32)

    # Small batch: whole batch in a single lane-dense grid step.
    x_small = jax.random.normal(k_x, (16, input_dim), jnp.float32)
    out = jax.block_until_ready(
        encoder_forward(x_small, *params_f32, latent_dim=latent_dim))
    ref = encoder_reference(x_small, w1, b1, w2, b2, w3, b3)
    assert out.shape == (16, latent_dim)
    assert jnp.allclose(out, ref, atol=1e-4, rtol=1e-4), "f32 mismatch vs reference"

    # Larger batch: auto tile selection yields >=2 grid steps on the parallel
    # batch axis (both TensorCores busy on v7x).
    x_big = jax.random.normal(k_x2, (256, input_dim), jnp.float32)
    out_big = jax.block_until_ready(
        encoder_forward(x_big, *params_f32, latent_dim=latent_dim))
    ref_big = encoder_reference(x_big, w1, b1, w2, b2, w3, b3)
    assert out_big.shape == (256, latent_dim)
    assert jnp.allclose(out_big, ref_big, atol=1e-4, rtol=1e-4), "f32 (grid) mismatch"

    # --- bf16 streaming path (recommended default on v6e/v7x), bf16 output ----
    params_bf16 = prepare_encoder_params(w1, b1, w2, b2, w3, b3,
                                         compute_dtype=jnp.bfloat16)
    out_bf16 = jax.block_until_ready(
        encoder_forward(x_big, *params_bf16, latent_dim=latent_dim,
                        out_dtype=jnp.bfloat16))
    assert out_bf16.dtype == jnp.bfloat16
    assert jnp.allclose(out_bf16.astype(jnp.float32), ref_big,
                        atol=1e-1, rtol=1e-1), "bf16 mismatch"

    _ = suggest_compute_dtype()  # hardware-aware default (bf16 on v6e/v7x)

    print("KERNEL_OK")
</pallas_src>

<mosaic_0001>
module attributes {stable_mosaic.version = 11 : i64} {
  func.func @encoder_kernel(%arg0: i32, %arg1: memref<16x24xf32, #tpu.memory_space<vmem>>, %arg2: memref<24x128xf32, #tpu.memory_space<vmem>>, %arg3: memref<128x128xf32, #tpu.memory_space<vmem>>, %arg4: memref<128x128xf32, #tpu.memory_space<vmem>>, %arg5: memref<3x128xf32, #tpu.memory_space<vmem>>, %arg6: memref<16x128xf32, #tpu.memory_space<vmem>>) attributes {dimension_semantics = [#tpu.dimension_semantics<parallel>], iteration_bounds = array<i64: 1>, scalar_prefetch = 0 : i64, scratch_operands = 0 : i64, tpu.core_type = #tpu.core_type<tc>, window_params = [{transform_indices = @transform_0, window_bounds = array<i64: 16, 24>}, {pipeline_mode = #tpu.pipeline_mode<synchronous>, transform_indices = @transform_1, window_bounds = array<i64: 24, 128>}, {pipeline_mode = #tpu.pipeline_mode<synchronous>, transform_indices = @transform_2, window_bounds = array<i64: 128, 128>}, {pipeline_mode = #tpu.pipeline_mode<synchronous>, transform_indices = @transform_3, window_bounds = array<i64: 128, 128>}, {pipeline_mode = #tpu.pipeline_mode<synchronous>, transform_indices = @transform_4, window_bounds = array<i64: 3, 128>}, {transform_indices = @transform_5, window_bounds = array<i64: 16, 128>}]} {
    %c0 = arith.constant 0 : index
    %c0_0 = arith.constant 0 : index
    %0 = vector.load %arg1[%c0, %c0_0] : memref<16x24xf32, #tpu.memory_space<vmem>>, vector<16x24xf32>
    %c0_1 = arith.constant 0 : index
    %c0_2 = arith.constant 0 : index
    %1 = vector.load %arg5[%c0_1, %c0_2] : memref<3x128xf32, #tpu.memory_space<vmem>>, vector<3x128xf32>
    %c0_3 = arith.constant 0 : index
    %c0_4 = arith.constant 0 : index
    %2 = vector.load %arg2[%c0_3, %c0_4] : memref<24x128xf32, #tpu.memory_space<vmem>>, vector<24x128xf32>
    %cst = arith.constant dense<0.000000e+00> : vector<16x128xf32>
    %3 = tpu.matmul %0, %2, %cst {dimension_numbers = #tpu.dot_dimension_numbers<[1], [0], [0], [1], [0, 0, 1, 1], [], []>} : vector<16x24xf32>, vector<24x128xf32>, vector<16x128xf32> -> vector<16x128xf32>
    %4 = vector.extract_strided_slice %1 {offsets = [0, 0], sizes = [1, 128], strides = [1, 1]} : vector<3x128xf32> to vector<1x128xf32>
    %5 = vector.broadcast %4 : vector<1x128xf32> to vector<16x128xf32>
    %6 = arith.addf %3, %5 : vector<16x128xf32>
    %7 = arith.negf %6 : vector<16x128xf32>
    %8 = math.exp %7 : vector<16x128xf32>
    %cst_5 = arith.constant 1.000000e+00 : f32
    %9 = vector.broadcast %cst_5 : f32 to vector<16x128xf32>
    %10 = arith.addf %9, %8 : vector<16x128xf32>
    %11 = arith.divf %9, %10 : vector<16x128xf32>
    %12 = arith.mulf %6, %11 : vector<16x128xf32>
    %c0_6 = arith.constant 0 : index
    %c0_7 = arith.constant 0 : index
    %13 = vector.load %arg3[%c0_6, %c0_7] : memref<128x128xf32, #tpu.memory_space<vmem>>, vector<128x128xf32>
    %cst_8 = arith.constant dense<0.000000e+00> : vector<16x128xf32>
    %14 = tpu.matmul %12, %13, %cst_8 {dimension_numbers = #tpu.dot_dimension_numbers<[1], [0], [0], [1], [0, 0, 1, 1], [], []>} : vector<16x128xf32>, vector<128x128xf32>, vector<16x128xf32> -> vector<16x128xf32>
    %15 = vector.extract_strided_slice %1 {offsets = [1, 0], sizes = [1, 128], strides = [1, 1]} : vector<3x128xf32> to vector<1x128xf32>
    %16 = vector.broadcast %15 : vector<1x128xf32> to vector<16x128xf32>
    %17 = arith.addf %14, %16 : vector<16x128xf32>
    %18 = arith.negf %17 : vector<16x128xf32>
    %19 = math.exp %18 : vector<16x128xf32>
    %cst_9 = arith.constant 1.000000e+00 : f32
    %20 = vector.broadcast %cst_9 : f32 to vector<16x128xf32>
    %21 = arith.addf %20, %19 : vector<16x128xf32>
    %22 = arith.divf %20, %21 : vector<16x128xf32>
    %23 = arith.mulf %17, %22 : vector<16x128xf32>
    %c0_10 = arith.constant 0 : index
    %c0_11 = arith.constant 0 : index
    %24 = vector.load %arg4[%c0_10, %c0_11] : memref<128x128xf32, #tpu.memory_space<vmem>>, vector<128x128xf32>
    %cst_12 = arith.constant dense<0.000000e+00> : vector<16x128xf32>
    %25 = tpu.matmul %23, %24, %cst_12 {dimension_numbers = #tpu.dot_dimension_numbers<[1], [0], [0], [1], [0, 0, 1, 1], [], []>} : vector<16x128xf32>, vector<128x128xf32>, vector<16x128xf32> -> vector<16x128xf32>
    %26 = vector.extract_strided_slice %1 {offsets = [2, 0], sizes = [1, 128], strides = [1, 1]} : vector<3x128xf32> to vector<1x128xf32>
    %27 = vector.broadcast %26 : vector<1x128xf32> to vector<16x128xf32>
    %28 = arith.addf %25, %27 : vector<16x128xf32>
    %c0_13 = arith.constant 0 : index
    %c0_14 = arith.constant 0 : index
    %29 = vector.load %arg6[%c0_13, %c0_14] : memref<16x128xf32, #tpu.memory_space<vmem>>, vector<16x128xf32>
    tpu.vector_store %arg6[%c0_13, %c0_14], %28 {strides = array<i32>} : memref<16x128xf32, #tpu.memory_space<vmem>>, vector<16x128xf32>,
    return
  }
  func.func @transform_0(%arg0: i32) -> (i32, i32) {
    %c0_i32 = arith.constant 0 : i32
    %c0_i32_0 = arith.constant 0 : i32
    return %arg0, %c0_i32 : i32, i32
  }
  func.func @transform_1(%arg0: i32) -> (i32, i32) {
    %c0_i32 = arith.constant 0 : i32
    %c0_i32_0 = arith.constant 0 : i32
    %c0_i32_1 = arith.constant 0 : i32
    return %c0_i32, %c0_i32_0 : i32, i32
  }
  func.func @transform_2(%arg0: i32) -> (i32, i32) {
    %c0_i32 = arith.constant 0 : i32
    %c0_i32_0 = arith.constant 0 : i32
    %c0_i32_1 = arith.constant 0 : i32
    return %c0_i32, %c0_i32_0 : i32, i32
  }
  func.func @transform_3(%arg0: i32) -> (i32, i32) {
    %c0_i32 = arith.constant 0 : i32
    %c0_i32_0 = arith.constant 0 : i32
    %c0_i32_1 = arith.constant 0 : i32
    return %c0_i32, %c0_i32_0 : i32, i32
  }
  func.func @transform_4(%arg0: i32) -> (i32, i32) {
    %c0_i32 = arith.constant 0 : i32
    %c0_i32_0 = arith.constant 0 : i32
    %c0_i32_1 = arith.constant 0 : i32
    return %c0_i32, %c0_i32_0 : i32, i32
  }
  func.func @transform_5(%arg0: i32) -> (i32, i32) {
    %c0_i32 = arith.constant 0 : i32
    %c0_i32_0 = arith.constant 0 : i32
    return %arg0, %c0_i32 : i32, i32
  }
}

</mosaic_0001>

<llo_original>
// kernel: encoder_forward.1
$region0: #{encoder_forward.1}
  #allocation0 [shape = 'u32[]', space=smem, size = 0x4, offset = 0x4, fixed_abs, tag = 'smem constant byte address 0x4 - core index']
  #allocation1 [shape = 'u32[144,128]{1,0:T(1,128)}', space=vmem, size = 0x12000, scoped, tag = 'internal scratch']
  %s0 = inlined_call_operand.hbm [shape: f32[16,24], index: 0, kind: input, shape index: {}]
  %s1 = inlined_call_operand.hbm [shape: f32[24,128], index: 1, kind: input, shape index: {}]
  %s2 = inlined_call_operand.hbm [shape: f32[128,128], index: 2, kind: input, shape index: {}]
  %s3 = inlined_call_operand.hbm [shape: f32[128,128], index: 3, kind: input, shape index: {}]
  %s4 = inlined_call_operand.vmem [shape: f32[3,128], index: 4, kind: input, shape index: {}]
  %s5 = inlined_call_operand.hbm [shape: f32[16,128], index: 5, kind: output, shape index: {}]
  %s6 = sld [smem:[#allocation0]]
  $region46: #{encoder_forward.1} parent=0
    _
  %s8 = ssub.s32 1, %s6
  %s9 = scalar_select 0, %s8, %s6
  $region1: #{encoder_forward.1} parent=0
    #allocation2 [shape = 'u8[8192]{0}', space=vmem, size = 0x2000, scoped, tag = 'input window, operand 0, single buffered']
    #allocation3 [shape = 's32[1]{0}', space=sflag, size = 0x4, scoped, tag = 'scoped memory for encoder_forward.1']
    #allocation4 [shape = 's32[1]{0}', space=sflag, size = 0x4, scoped, tag = 'scoped memory for encoder_forward.1']
    #allocation5 [shape = 'u8[12288]{0}', space=vmem, size = 0x3000, scoped, tag = 'input window, operand 1, single buffered']
    #allocation6 [shape = 's32[1]{0}', space=sflag, size = 0x4, scoped, tag = 'scoped memory for encoder_forward.1']
    #allocation7 [shape = 'u8[65536]{0}', space=vmem, size = 0x10000, scoped, tag = 'input window, operand 2, single buffered']
    #allocation8 [shape = 'u8[65536]{0}', space=vmem, size = 0x10000, scoped, tag = 'input window, operand 3, single buffered']
    #allocation9 [shape = 's32[1]{0}', space=sflag, size = 0x4, scoped, tag = 'scoped memory for encoder_forward.1']
    #allocation10 [shape = 'u8[8192]{0}', space=vmem, size = 0x2000, scoped, tag = 'output window, operand 0, single buffered']
    %10 = vsyncpa [#allocation3], 0
    %11 = vsyncpa [#allocation6], 0
    %12 = vsyncpa [#allocation9], 0
    %13 = vsyncpa [#allocation4], 0
    // Predicated region
    $region2: #{encoder_forward.1} parent=1 // pred_check
      _
    $region3: #{encoder_forward.1} parent=1 // pred_check_branch
      %15 = sbr.rel (0) target = $region5
    $region4: #{encoder_forward.1} parent=1 // pred_region
      %s17 = ssub.s32 256, 256
      %18 = vsyncadd [#allocation3], %s17
      %s19 = sshll.u32 [#allocation2], 4
      %s20 = int_to_ptr.vmem [resolvable:$true] %s19
      %25 = dma.hbm_to_vmem [thread:$0]  %s0, 256, %s20, [#allocation3], 128, 128, 8
    $region5: #{encoder_forward.1} parent=1 // pred_fallthru
      _
    // Predicated region
    $region6: #{encoder_forward.1} parent=1 // pred_check
      _
    $region7: #{encoder_forward.1} parent=1 // pred_check_branch
      %27 = sbr.rel (0) target = $region9
    $region8: #{encoder_forward.1} parent=1 // pred_region
      %s29 = ssub.s32 384, 384
      %30 = vsyncadd [#allocation6], %s29
      %s31 = sshll.u32 [#allocation5], 4
      %s32 = int_to_ptr.vmem [resolvable:$true] %s31
      %37 = dma.hbm_to_vmem [thread:$0]  %s1, 384, %s32, [#allocation6], 128, 128, 8
    $region9: #{encoder_forward.1} parent=1 // pred_fallthru
      _
    // Predicated region
    $region10: #{encoder_forward.1} parent=1 // pred_check
      _
    $region11: #{encoder_forward.1} parent=1 // pred_check_branch
      %39 = sbr.rel (0) target = $region13
    $region12: #{encoder_forward.1} parent=1 // pred_region
      %s41 = ssub.s32 2048, 2048
      %42 = vsyncadd [#allocation6], %s41
      %s43 = sshll.u32 [#allocation7], 4
      %s44 = int_to_ptr.vmem [resolvable:$true] %s43
      %49 = dma.hbm_to_vmem [thread:$0]  %s2, 2048, %s44, [#allocation6], 128, 128, 8
    $region13: #{encoder_forward.1} parent=1 // pred_fallthru
      _
    // Predicated region
    $region14: #{encoder_forward.1} parent=1 // pred_check
      _
    $region15: #{encoder_forward.1} parent=1 // pred_check_branch
      %51 = sbr.rel (0) target = $region17
    $region16: #{encoder_forward.1} parent=1 // pred_region
      %s53 = ssub.s32 2048, 2048
      %54 = vsyncadd [#allocation9], %s53
      %s55 = sshll.u32 [#allocation8], 4
      %s56 = int_to_ptr.vmem [resolvable:$true] %s55
      %61 = dma.hbm_to_vmem [thread:$0]  %s3, 2048, %s56, [#allocation9], 128, 128, 8
    $region17: #{encoder_forward.1} parent=1 // pred_fallthru
      _
    // Predicated region
    $region18: #{encoder_forward.1} parent=1 // pred_check
      _
    $region19: #{encoder_forward.1} parent=1 // pred_check_branch
      %63 = sbr.rel (0) target = $region21
    $region20: #{encoder_forward.1} parent=1 // pred_region
      _
    $region21: #{encoder_forward.1} parent=1 // pred_fallthru
      _
    // Predicated region
    $region22: #{encoder_forward.1} parent=1 // pred_check
      _
    $region23: #{encoder_forward.1} parent=1 // pred_check_branch
      %65 = sbr.rel (0) target = $region25
    $region24: #{encoder_forward.1} parent=1 // pred_region
      %66 = dma.done [#allocation3], 256
    $region25: #{encoder_forward.1} parent=1 // pred_fallthru
      _
    // Predicated region
    $region26: #{encoder_forward.1} parent=1 // pred_check
      _
    $region27: #{encoder_forward.1} parent=1 // pred_check_branch
      %68 = sbr.rel (0) target = $region29
    $region28: #{encoder_forward.1} parent=1 // pred_region
      %69 = dma.done [#allocation6], 384
    $region29: #{encoder_forward.1} parent=1 // pred_fallthru
      _
    // Predicated region
    $region30: #{encoder_forward.1} parent=1 // pred_check
      _
    $region31: #{encoder_forward.1} parent=1 // pred_check_branch
      %71 = sbr.rel (0) target = $region33
    $region32: #{encoder_forward.1} parent=1 // pred_region
      %72 = dma.done [#allocation6], 2048
    $region33: #{encoder_forward.1} parent=1 // pred_fallthru
      _
    // Predicated region
    $region34: #{encoder_forward.1} parent=1 // pred_check
      _
    $region35: #{encoder_forward.1} parent=1 // pred_check_branch
      %74 = sbr.rel (0) target = $region37
    $region36: #{encoder_forward.1} parent=1 // pred_region
      %75 = dma.done [#allocation9], 2048
    $region37: #{encoder_forward.1} parent=1 // pred_fallthru
      _
    %v76 = vld [vmem:[#allocation2] sm:$0xff]
    %v77 = vld [vmem:[#allocation2 + $0x8] sm:$0xff]
    %v78 = vld [vmem:[%s4] sm:$0x7]
    %v79 = vld [vmem:[#allocation5] sm:$0xff]
    %v80 = vld [vmem:[#allocation5 + $0x8] sm:$0xff]
    %v81 = vld [vmem:[#allocation5 + $0x10] sm:$0xff]
    %v82 = vlaneseq
    %v83 = vshrl.u32 %v82, 7
    %v84 = vsub.s32 0, %v83
    %v85 = vrot.slane %v78, %v84
    %vm86 = vcmask 195584
    %v88 = vsel %vm86, %v76, 0
    %v91 = vsel %vm86, %v77, 0
    %93 = vmatprep.subr.mxu0 0.0
    %94 = vmatpush1.msra.mxu0 %v79
    %95 = vmatprep.subr.mxu0 0.0
    %96 = vmatpush1.msra.mxu0 %v80
    %97 = vmatprep.subr.mxu0 0.0
    %98 = vmatpush1.msra.mxu0 %v81
    %99 = vmatprep.subr.mxu0 0.0
    %100 = vmatpush1.msra.mxu0 0.0
    %101 = vmatprep.subr.mxu0 0.0
    %102 = vmatpush1.msra.mxu0 0.0
    %103 = vmatprep.subr.mxu0 0.0
    %104 = vmatpush1.msra.mxu0 0.0
    %105 = vmatprep.subr.mxu0 0.0
    %106 = vmatpush1.msra.mxu0 0.0
    %107 = vmatprep.subr.mxu0 0.0
    %108 = vmatpush1.msra.mxu0 0.0
    %109 = vmatprep.subr.mxu0 0.0
    %110 = vmatpush1.msra.mxu0 0.0
    %111 = vmatprep.subr.mxu0 0.0
    %112 = vmatpush1.msra.mxu0 0.0
    %113 = vmatprep.subr.mxu0 0.0
    %114 = vmatpush1.msra.mxu0 0.0
    %115 = vmatprep.subr.mxu0 0.0
    %116 = vmatpush1.msra.mxu0 0.0
    %117 = vmatprep.subr.mxu0 0.0
    %118 = vmatpush1.msra.mxu0 0.0
    %119 = vmatprep.subr.mxu0 0.0
    %120 = vmatpush1.msra.mxu0 0.0
    %121 = vmatprep.subr.mxu0 0.0
    %122 = vmatpush1.msra.mxu0 0.0
    %123 = vmatprep.subr.mxu0 0.0
    %124 = vmatpush1.msra.mxu0 0.0
    %125 = vmatprep.subr.mxu0 0.0
    %126 = vmatpush1.msra.mxu0 0.0
    %127 = vmatprep.subr.mxu0 0.0
    %128 = vmatpush1.msra.mxu0 0.0
    %129 = vmatprep.subr.mxu0 0.0
    %130 = vmatpush1.msra.mxu0 0.0
    %131 = vmatprep.subr.mxu0 0.0
    %132 = vmatpush1.msra.mxu0 0.0
    %133 = vmatprep.subr.mxu0 0.0
    %134 = vmatpush1.msra.mxu0 0.0
    %135 = vmatprep.subr.mxu0 0.0
    %136 = vmatpush1.msra.mxu0 0.0
    %137 = vmatprep.subr.mxu0 0.0
    %138 = vmatpush1.msra.mxu0 0.0
    %139 = vmatprep.subr.mxu0 0.0
    %140 = vmatpush1.msra.mxu0 0.0
    %141 = vmatprep.subr.mxu0 0.0
    %142 = vmatpush1.msra.mxu0 0.0
    %143 = vmatprep.subr.mxu0 0.0
    %144 = vmatpush1.msra.mxu0 0.0
    %145 = vmatprep.subr.mxu0 0.0
    %146 = vmatpush1.msra.mxu0 0.0
    %147 = vmatprep.subr.mxu0 0.0
    %148 = vmatpush1.msra.mxu0 0.0
    %149 = vmatprep.subr.mxu0 0.0
    %150 = vmatpush1.msra.mxu0 0.0
    %151 = vmatprep.subr.mxu0 0.0
    %152 = vmatpush1.msra.mxu0 0.0
    %153 = vmatprep.subr.mxu0 0.0
    %154 = vmatpush1.msra.mxu0 0.0
    %155 = vmatprep.subr.mxu0 0.0
    %156 = vmatpush1.msra.mxu0 0.0
    %157 = vmatprep.mubr.f32.mxu0 0.0
    %158 = vmatmul.mubr.f32.gmra.mrb[0].mxu0 %v88
    %v159 = vpop.f32.mrb[0].mxu0
    %v160 = vadd.f32 %v85, %v159
    %v161 = vpop.f32.mrb[0].mxu0
    %162 = vmatprep.mubr.f32.mxu0 0.0
    %163 = vmatmul.mubr.f32.gmra.mrb[0].mxu0 %v91
    %v164 = vpop.f32.mrb[0].mxu0
    %v165 = vadd.f32 %v85, %v164
    %v166 = vpop.f32.mrb[0].mxu0
    %167 = vdwg.mxu0
    %v168 = vxor.u32 %v160, 2147483648
    %v169 = vxor.u32 %v165, 2147483648
    %v170 = vmul.f32 %v168, 1.442695
    %v171 = vpow.pop %v170
    %v172 = vmul.f32 %v169, 1.442695
    %v173 = vpow.pop %v172
    %v174 = vadd.f32 %v171, 1.0
    %v175 = vadd.f32 %v173, 1.0
    %v176 = vrcp.pop %v174
    %v177 = vmul.f32 1.0, %v176
    %v178 = vrcp.pop %v175
    %v179 = vmul.f32 1.0, %v178
    %v180 = vmul.f32 %v160, %v177
    %v181 = vmul.f32 %v165, %v179
    %v182 = vld [vmem:[#allocation7] sm:$0xff]
    %v183 = vld [vmem:[#allocation7 + $0x8] sm:$0xff]
    %v184 = vld [vmem:[#allocation7 + $0x10] sm:$0xff]
    %v185 = vld [vmem:[#allocation7 + $0x18] sm:$0xff]
    %v186 = vld [vmem:[#allocation7 + $0x20] sm:$0xff]
    %v187 = vld [vmem:[#allocation7 + $0x28] sm:$0xff]
    %v188 = vld [vmem:[#allocation7 + $0x30] sm:$0xff]
    %v189 = vld [vmem:[#allocation7 + $0x38] sm:$0xff]
    %v190 = vld [vmem:[#allocation7 + $0x40] sm:$0xff]
    %v191 = vld [vmem:[#allocation7 + $0x48] sm:$0xff]
    %v192 = vld [vmem:[#allocation7 + $0x50] sm:$0xff]
    %v193 = vld [vmem:[#allocation7 + $0x58] sm:$0xff]
    %v194 = vld [vmem:[#allocation7 + $0x60] sm:$0xff]
    %v195 = vld [vmem:[#allocation7 + $0x68] sm:$0xff]
    %v196 = vld [vmem:[#allocation7 + $0x70] sm:$0xff]
    %v197 = vld [vmem:[#allocation7 + $0x78] sm:$0xff]
    %v198 = vlaneseq
    %v199 = vshrl.u32 %v198, 7
    %v200 = vsub.s32 1, %v199
    %v201 = vrot.slane %v78, %v200
    %202 = vmatprep.subr.mxu0 0.0
    %203 = vmatpush1.msra.mxu0 %v182
    %204 = vmatprep.subr.mxu0 0.0
    %205 = vmatpush1.msra.mxu0 %v183
    %206 = vmatprep.subr.mxu0 0.0
    %207 = vmatpush1.msra.mxu0 %v184
    %208 = vmatprep.subr.mxu0 0.0
    %209 = vmatpush1.msra.mxu0 %v185
    %210 = vmatprep.subr.mxu0 0.0
    %211 = vmatpush1.msra.mxu0 %v186
    %212 = vmatprep.subr.mxu0 0.0
    %213 = vmatpush1.msra.mxu0 %v187
    %214 = vmatprep.subr.mxu0 0.0
    %215 = vmatpush1.msra.mxu0 %v188
    %216 = vmatprep.subr.mxu0 0.0
    %217 = vmatpush1.msra.mxu0 %v189
    %218 = vmatprep.subr.mxu0 0.0
    %219 = vmatpush1.msra.mxu0 %v190
    %220 = vmatprep.subr.mxu0 0.0
    %221 = vmatpush1.msra.mxu0 %v191
    %222 = vmatprep.subr.mxu0 0.0
    %223 = vmatpush1.msra.mxu0 %v192
    %224 = vmatprep.subr.mxu0 0.0
    %225 = vmatpush1.msra.mxu0 %v193
    %226 = vmatprep.subr.mxu0 0.0
    %227 = vmatpush1.msra.mxu0 %v194
    %228 = vmatprep.subr.mxu0 0.0
    %229 = vmatpush1.msra.mxu0 %v195
    %230 = vmatprep.subr.mxu0 0.0
    %231 = vmatpush1.msra.mxu0 %v196
    %232 = vmatprep.subr.mxu0 0.0
    %233 = vmatpush1.msra.mxu0 %v197
    %234 = vmatprep.subr.mxu0 0.0
    %235 = vmatpush1.msra.mxu0 0.0
    %236 = vmatprep.subr.mxu0 0.0
    %237 = vmatpush1.msra.mxu0 0.0
    %238 = vmatprep.subr.mxu0 0.0
    %239 = vmatpush1.msra.mxu0 0.0
    %240 = vmatprep.subr.mxu0 0.0
    %241 = vmatpush1.msra.mxu0 0.0
    %242 = vmatprep.subr.mxu0 0.0
    %243 = vmatpush1.msra.mxu0 0.0
    %244 = vmatprep.subr.mxu0 0.0
    %245 = vmatpush1.msra.mxu0 0.0
    %246 = vmatprep.subr.mxu0 0.0
    %247 = vmatpush1.msra.mxu0 0.0
    %248 = vmatprep.subr.mxu0 0.0
    %249 = vmatpush1.msra.mxu0 0.0
    %250 = vmatprep.subr.mxu0 0.0
    %251 = vmatpush1.msra.mxu0 0.0
    %252 = vmatprep.subr.mxu0 0.0
    %253 = vmatpush1.msra.mxu0 0.0
    %254 = vmatprep.subr.mxu0 0.0
    %255 = vmatpush1.msra.mxu0 0.0
    %256 = vmatprep.subr.mxu0 0.0
    %257 = vmatpush1.msra.mxu0 0.0
    %258 = vmatprep.subr.mxu0 0.0
    %259 = vmatpush1.msra.mxu0 0.0
    %260 = vmatprep.subr.mxu0 0.0
    %261 = vmatpush1.msra.mxu0 0.0
    %262 = vmatprep.subr.mxu0 0.0
    %263 = vmatpush1.msra.mxu0 0.0
    %264 = vmatprep.subr.mxu0 0.0
    %265 = vmatpush1.msra.mxu0 0.0
    %266 = vmatprep.mubr.f32.mxu0 0.0
    %267 = vmatmul.mubr.f32.gmra.mrb[0].mxu0 %v180
    %v268 = vpop.f32.mrb[0].mxu0
    %v269 = vadd.f32 %v201, %v268
    %v270 = vpop.f32.mrb[0].mxu0
    %271 = vmatprep.mubr.f32.mxu0 0.0
    %272 = vmatmul.mubr.f32.gmra.mrb[0].mxu0 %v181
    %v273 = vpop.f32.mrb[0].mxu0
    %v274 = vadd.f32 %v201, %v273
    %v275 = vpop.f32.mrb[0].mxu0
    %276 = vdwg.mxu0
    %v277 = vxor.u32 %v269, 2147483648
    %v278 = vxor.u32 %v274, 2147483648
    %v279 = vmul.f32 %v277, 1.442695
    %v280 = vpow.pop %v279
    %v281 = vmul.f32 %v278, 1.442695
    %v282 = vpow.pop %v281
    %v283 = vadd.f32 %v280, 1.0
    %v284 = vadd.f32 %v282, 1.0
    %v285 = vrcp.pop %v283
    %v286 = vmul.f32 1.0, %v285
    %v287 = vrcp.pop %v284
    %v288 = vmul.f32 1.0, %v287
    %v289 = vmul.f32 %v269, %v286
    %v290 = vmul.f32 %v274, %v288
    %v291 = vld [vmem:[#allocation8] sm:$0xff]
    %v292 = vld [vmem:[#allocation8 + $0x8] sm:$0xff]
    %v293 = vld [vmem:[#allocation8 + $0x10] sm:$0xff]
    %v294 = vld [vmem:[#allocation8 + $0x18] sm:$0xff]
    %v295 = vld [vmem:[#allocation8 + $0x20] sm:$0xff]
    %v296 = vld [vmem:[#allocation8 + $0x28] sm:$0xff]
    %v297 = vld [vmem:[#allocation8 + $0x30] sm:$0xff]
    %v298 = vld [vmem:[#allocation8 + $0x38] sm:$0xff]
    %v299 = vld [vmem:[#allocation8 + $0x40] sm:$0xff]
    %v300 = vld [vmem:[#allocation8 + $0x48] sm:$0xff]
    %v301 = vld [vmem:[#allocation8 + $0x50] sm:$0xff]
    %v302 = vld [vmem:[#allocation8 + $0x58] sm:$0xff]
    %v303 = vld [vmem:[#allocation8 + $0x60] sm:$0xff]
    %v304 = vld [vmem:[#allocation8 + $0x68] sm:$0xff]
    %v305 = vld [vmem:[#allocation8 + $0x70] sm:$0xff]
    %v306 = vld [vmem:[#allocation8 + $0x78] sm:$0xff]
    %v307 = vlaneseq
    %v308 = vshrl.u32 %v307, 7
    %v309 = vsub.s32 2, %v308
    %v310 = vrot.slane %v78, %v309
    %311 = vmatprep.subr.mxu0 0.0
    %312 = vmatpush1.msra.mxu0 %v291
    %313 = vmatprep.subr.mxu0 0.0
    %314 = vmatpush1.msra.mxu0 %v292
    %315 = vmatprep.subr.mxu0 0.0
    %316 = vmatpush1.msra.mxu0 %v293
    %317 = vmatprep.subr.mxu0 0.0
    %318 = vmatpush1.msra.mxu0 %v294
    %319 = vmatprep.subr.mxu0 0.0
    %320 = vmatpush1.msra.mxu0 %v295
    %321 = vmatprep.subr.mxu0 0.0
    %322 = vmatpush1.msra.mxu0 %v296
    %323 = vmatprep.subr.mxu0 0.0
    %324 = vmatpush1.msra.mxu0 %v297
    %325 = vmatprep.subr.mxu0 0.0
    %326 = vmatpush1.msra.mxu0 %v298
    %327 = vmatprep.subr.mxu0 0.0
    %328 = vmatpush1.msra.mxu0 %v299
    %329 = vmatprep.subr.mxu0 0.0
    %330 = vmatpush1.msra.mxu0 %v300
    %331 = vmatprep.subr.mxu0 0.0
    %332 = vmatpush1.msra.mxu0 %v301
    %333 = vmatprep.subr.mxu0 0.0
    %334 = vmatpush1.msra.mxu0 %v302
    %335 = vmatprep.subr.mxu0 0.0
    %336 = vmatpush1.msra.mxu0 %v303
    %337 = vmatprep.subr.mxu0 0.0
    %338 = vmatpush1.msra.mxu0 %v304
    %339 = vmatprep.subr.mxu0 0.0
    %340 = vmatpush1.msra.mxu0 %v305
    %341 = vmatprep.subr.mxu0 0.0
    %342 = vmatpush1.msra.mxu0 %v306
    %343 = vmatprep.subr.mxu0 0.0
    %344 = vmatpush1.msra.mxu0 0.0
    %345 = vmatprep.subr.mxu0 0.0
    %346 = vmatpush1.msra.mxu0 0.0
    %347 = vmatprep.subr.mxu0 0.0
    %348 = vmatpush1.msra.mxu0 0.0
    %349 = vmatprep.subr.mxu0 0.0
    %350 = vmatpush1.msra.mxu0 0.0
    %351 = vmatprep.subr.mxu0 0.0
    %352 = vmatpush1.msra.mxu0 0.0
    %353 = vmatprep.subr.mxu0 0.0
    %354 = vmatpush1.msra.mxu0 0.0
    %355 = vmatprep.subr.mxu0 0.0
    %356 = vmatpush1.msra.mxu0 0.0
    %357 = vmatprep.subr.mxu0 0.0
    %358 = vmatpush1.msra.mxu0 0.0
    %359 = vmatprep.subr.mxu0 0.0
    %360 = vmatpush1.msra.mxu0 0.0
    %361 = vmatprep.subr.mxu0 0.0
    %362 = vmatpush1.msra.mxu0 0.0
    %363 = vmatprep.subr.mxu0 0.0
    %364 = vmatpush1.msra.mxu0 0.0
    %365 = vmatprep.subr.mxu0 0.0
    %366 = vmatpush1.msra.mxu0 0.0
    %367 = vmatprep.subr.mxu0 0.0
    %368 = vmatpush1.msra.mxu0 0.0
    %369 = vmatprep.subr.mxu0 0.0
    %370 = vmatpush1.msra.mxu0 0.0
    %371 = vmatprep.subr.mxu0 0.0
    %372 = vmatpush1.msra.mxu0 0.0
    %373 = vmatprep.subr.mxu0 0.0
    %374 = vmatpush1.msra.mxu0 0.0
    %375 = vmatprep.mubr.f32.mxu0 0.0
    %376 = vmatmul.mubr.f32.gmra.mrb[0].mxu0 %v289
    %v377 = vpop.f32.mrb[0].mxu0
    %v378 = vadd.f32 %v310, %v377
    %v379 = vpop.f32.mrb[0].mxu0
    %380 = vmatprep.mubr.f32.mxu0 0.0
    %381 = vmatmul.mubr.f32.gmra.mrb[0].mxu0 %v290
    %v382 = vpop.f32.mrb[0].mxu0
    %v383 = vadd.f32 %v310, %v382
    %v384 = vpop.f32.mrb[0].mxu0
    %385 = vdwg.mxu0
    %386 = vst [vmem:[#allocation10] sm:$0xff] %v378
    %387 = vst [vmem:[#allocation10 + $0x8] sm:$0xff] %v383
    // Predicated region
    $region38: #{encoder_forward.1} parent=1 // pred_check
      _
    $region39: #{encoder_forward.1} parent=1 // pred_check_branch
      %389 = sbr.rel (0) target = $region41
    $region40: #{encoder_forward.1} parent=1 // pred_region
      %s391 = ssub.s32 256, 256
      %392 = vsyncadd [#allocation4], %s391
      %s393 = sshll.u32 [#allocation10], 4
      %s394 = int_to_ptr.vmem [resolvable:$true] %s393
      %399 = dma.vmem_to_hbm [thread:$0]  %s394, 256, %s5, [#allocation4], 128, 128, 8
    $region41: #{encoder_forward.1} parent=1 // pred_fallthru
      _
    // Predicated region
    $region42: #{encoder_forward.1} parent=1 // pred_check
      _
    $region43: #{encoder_forward.1} parent=1 // pred_check_branch
      %401 = sbr.rel (0) target = $region45
    $region44: #{encoder_forward.1} parent=1 // pred_region
      %402 = dma.done [#allocation4], 256
    $region45: #{encoder_forward.1} parent=1 // pred_fallthru
      _
    %403 = vsyncpa [#allocation3], 1
    %404 = vsyncpa [#allocation6], 1
    %405 = vsyncpa [#allocation9], 1
    %406 = vsyncpa [#allocation4], 1

</llo_original>
